<compile_context>
chip_gen: v5e
topology: v5e:2x2
jax: 0.10.0
libtpu: 0.0.40
codegen_flags: <defaults>
</compile_context>

<pallas_src>
import jax
import jax.numpy as jnp
from jax.experimental import pallas as pl
from jax.experimental.pallas import tpu as pltpu


# ----------------------------------------------------------------------------
# Kernel: whole ResMLP forward for one packed batch tile.  Affine scalars are
# already folded into W/b and rows are lane-packed via block-diagonal weights,
# so the body is pure matmul + bias + tanh + residual.
# ----------------------------------------------------------------------------
def resmlp_kernel(x_ref, w1_ref, b1_ref, w2_ref, b2_ref, wf_ref, bf_ref, out_ref):
    """
    x_ref  : VMEM [TILE, PD]      (PD = p*D, lane-dense packed rows)
    w1_ref : VMEM [L, PD, PD]     b1_ref : VMEM [L, 1, PD]
    w2_ref : VMEM [L, PD, PD]     b2_ref : VMEM [L, 1, PD]
    wf_ref : VMEM [PD, OT]        bf_ref : VMEM [1, OT]   (OT = 128-multiple)
    out_ref: VMEM [TILE, OT]
    """
    num_blocks = w1_ref.shape[0]
    x = x_ref[...]                          # f32
    # L is small -> static unrolled loop; all weights stay resident in VMEM.
    for l in range(num_blocks):
        h = jnp.tanh(
            jnp.dot(x, w1_ref[l], preferred_element_type=jnp.float32) + b1_ref[l]
        )
        h2 = jnp.dot(h, w2_ref[l], preferred_element_type=jnp.float32) + b2_ref[l]
        # ResBlock: act2(linear2(norm2(h)) + skip(x)); then ResMLP outer act.
        x = jnp.tanh(jnp.tanh(h2 + x))
    out_ref[...] = (
        jnp.dot(x, wf_ref[...], preferred_element_type=jnp.float32) + bf_ref[...]
    )


# ----------------------------------------------------------------------------
# One-time packing helpers (run in the wrapper, never per forward call).
# ----------------------------------------------------------------------------
def _round_up(a, b):
    return (a + b - 1) // b * b


def _block_diag(w, p):
    """Place p copies of w's trailing 2-D matrix on a block diagonal."""
    if p == 1:
        return w
    eye = jnp.eye(p, dtype=w.dtype)
    e = jnp.einsum("ij,...ab->...iajb", eye, w)
    *lead, _, a, _, b = e.shape
    return e.reshape(*lead, p * a, p * b)


def _device_config():
    """(lane target for packing, grid steps over the batch axis)."""
    lanes, steps = 128, 1
    try:
        kind = jax.devices()[0].device_kind.lower()
        if "v6" in kind or "v7" in kind or "tpu7" in kind:
            lanes = 256           # 256-wide MXU on v6e / v7x -> 8-way pack of D=32
        if "v7" in kind or "tpu7" in kind:
            steps = 2             # 2 TensorCores per chip -> shard the batch axis
    except Exception:             # detection failure: safe defaults
        pass
    return lanes, steps


def _choose_pack(d, lanes):
    """Rows-per-packed-row factor p so p*d is lane aligned."""
    for target in (lanes, 128):
        if target >= d and target % d == 0:
            return target // d
    return 1   # d does not divide 128: keep unpacked, blocks use full width


# ----------------------------------------------------------------------------
# Builder: fold + pack parameters once, return a jitted forward(x).
# ----------------------------------------------------------------------------
def build_resmlp_forward(g1, c1, g2, c2, w1, b1, w2, b2, wf, bf, *,
                         lanes=None, grid_steps=None):
    """Linear weights are stored as [in, out] so x @ W + b == torch Linear(x).
    g1/c1/g2/c2 are the per-block Affine (norm1/norm2) scalars, shape [L]."""
    num_blocks, d, _ = w1.shape
    o = wf.shape[1]

    auto_lanes, auto_steps = _device_config()
    lanes = auto_lanes if lanes is None else lanes
    grid_steps = auto_steps if grid_steps is None else grid_steps

    # Fold the scalar Affine into the Linear layers (changes FP order only in
    # the folded bias; validated well within the test tolerance at this D):
    #   (g*x + c) @ W + b == x @ (g*W) + (b + c * W.sum(axis=in))
    w1f = g1[:, None, None] * w1
    b1f = b1 + c1[:, None, None] * jnp.sum(w1, axis=1, keepdims=True)
    w2f = g2[:, None, None] * w2
    b2f = b2 + c2[:, None, None] * jnp.sum(w2, axis=1, keepdims=True)

    # Lane-dense repack: p rows of width d share one lane-aligned row; weights
    # become p-way block-diagonal (extra entries are exact zeros -> numerics
    # unchanged), biases tiled p times along lanes.
    p = _choose_pack(d, lanes)
    pd = p * d
    total_out = _round_up(p * o, 128)     # lane-dense, unmasked output stores
    assert total_out % p == 0
    o_seg = total_out // p                # padded per-row output width

    w1p = _block_diag(w1f, p)             # (L, pd, pd)
    w2p = _block_diag(w2f, p)
    b1p = jnp.tile(b1f, (1, 1, p))        # (L, 1, pd)
    b2p = jnp.tile(b2f, (1, 1, p))
    wf_pad = jnp.zeros((d, o_seg), jnp.float32).at[:, :o].set(wf)
    bf_pad = jnp.zeros((1, o_seg), jnp.float32).at[:, :o].set(bf)
    wfp = _block_diag(wf_pad, p)          # (pd, total_out)
    bfp = jnp.tile(bf_pad, (1, p))        # (1, total_out)

    params = (w1p, b1p, w2p, b2p, wfp, bfp)

    @jax.jit
    def _forward(x, params):
        w1p, b1p, w2p, b2p, wfp, bfp = params
        n = x.shape[0]
        n_pad = _round_up(n, p)
        if n_pad != n:                    # pad batch so it packs evenly
            x = jnp.zeros((n_pad, d), x.dtype).at[:n].set(x)
        rows = n_pad // p
        x_packed = x.reshape(rows, pd)    # p consecutive rows share one lane row

        # One grid step per TensorCore: per-step overhead (~0.35us) dominates
        # any DMA overlap at these sizes; fall back to 1 step if it won't tile.
        steps = grid_steps
        if steps > 1 and (rows % steps != 0 or (rows // steps) % 8 != 0):
            steps = 1
        tile = rows // steps

        cost = pl.CostEstimate(
            flops=int(n_pad * (4 * num_blocks * d * d + 2 * d * o_seg)),
            transcendentals=int(n_pad * 3 * num_blocks * d),
            bytes_accessed=int(4 * (x_packed.size + w1p.size + b1p.size
                                    + w2p.size + b2p.size + wfp.size + bfp.size
                                    + rows * total_out)),
        )

        out_packed = pl.pallas_call(
            resmlp_kernel,
            out_shape=jax.ShapeDtypeStruct((rows, total_out), jnp.float32),
            grid=(steps,),
            in_specs=[
                pl.BlockSpec((tile, pd), lambda i: (i, 0)),               # x tile
                pl.BlockSpec((num_blocks, pd, pd), lambda i: (0, 0, 0)),  # W1 stack
                pl.BlockSpec((num_blocks, 1, pd), lambda i: (0, 0, 0)),   # b1 stack
                pl.BlockSpec((num_blocks, pd, pd), lambda i: (0, 0, 0)),  # W2 stack
                pl.BlockSpec((num_blocks, 1, pd), lambda i: (0, 0, 0)),   # b2 stack
                pl.BlockSpec((pd, total_out), lambda i: (0, 0)),          # Wf
                pl.BlockSpec((1, total_out), lambda i: (0, 0)),           # bf
            ],
            out_specs=pl.BlockSpec((tile, total_out), lambda i: (i, 0)),
            compiler_params=pltpu.CompilerParams(
                dimension_semantics=("parallel",),
            ),
            cost_estimate=cost,
        )(x_packed, w1p, b1p, w2p, b2p, wfp, bfp)

        # Undo the row packing, drop the lane padding (fuses under this jit).
        return out_packed.reshape(n_pad, o_seg)[:n, :o]

    def forward(x):
        return _forward(x, params)

    return forward


# ----------------------------------------------------------------------------
# Pure-JAX reference matching the PyTorch module semantics (no folding/packing).
# ----------------------------------------------------------------------------
def resmlp_reference(x, g1, c1, g2, c2, w1, b1, w2, b2, wf, bf):
    num_blocks = w1.shape[0]
    for l in range(num_blocks):
        h = jnp.tanh((g1[l] * x + c1[l]) @ w1[l] + b1[l])
        h2 = (g2[l] * h + c2[l]) @ w2[l] + b2[l]
        x = jnp.tanh(jnp.tanh(h2 + x))
    return x @ wf + bf


if __name__ == "__main__":
    # ResMLP(input_dim=32, output_dim=8, block_nums=3), batch of 512 rows.
    # TODO(synk): ResBlock's skip Linear (in_size != out_size) is never used by
    # ResMLP (it always builds ResBlock(input_dim, input_dim)); not implemented.
    N, D, O, L = 512, 32, 8, 3

    key = jax.random.PRNGKey(0)
    keys = jax.random.split(key, 11)
    lim = 1.0 / jnp.sqrt(jnp.float32(D))

    x = jax.random.normal(keys[0], (N, D), dtype=jnp.float32)
    # Linear weights pre-transposed to [in, out] (y = x @ W + b == torch Linear).
    w1 = jax.random.uniform(keys[1], (L, D, D), jnp.float32, -lim, lim)
    b1 = jax.random.uniform(keys[2], (L, 1, D), jnp.float32, -lim, lim)
    w2 = jax.random.uniform(keys[3], (L, D, D), jnp.float32, -lim, lim)
    b2 = jax.random.uniform(keys[4], (L, 1, D), jnp.float32, -lim, lim)
    wf = jax.random.uniform(keys[5], (D, O), jnp.float32, -lim, lim)
    bf = jax.random.uniform(keys[6], (1, O), jnp.float32, -lim, lim)
    # Per-block Affine scalars (module init is ones/zeros; randomized here to
    # exercise the weight-folding path).
    g1 = 1.0 + 0.1 * jax.random.normal(keys[7], (L,), dtype=jnp.float32)
    c1 = 0.1 * jax.random.normal(keys[8], (L,), dtype=jnp.float32)
    g2 = 1.0 + 0.1 * jax.random.normal(keys[9], (L,), dtype=jnp.float32)
    c2 = 0.1 * jax.random.normal(keys[10], (L,), dtype=jnp.float32)

    forward = build_resmlp_forward(g1, c1, g2, c2, w1, b1, w2, b2, wf, bf)
    out = jax.block_until_ready(forward(x))

    ref = resmlp_reference(x, g1, c1, g2, c2, w1, b1, w2, b2, wf, bf)

    assert out.shape == (N, O), out.shape
    max_err = float(jnp.max(jnp.abs(out - ref)))
    assert jnp.allclose(out, ref, atol=5e-5, rtol=5e-5), max_err
    print("KERNEL_OK")
</pallas_src>

<mosaic_0001>
module attributes {stable_mosaic.version = 11 : i64} {
  func.func @resmlp_kernel(%arg0: i32, %arg1: memref<128x128xf32, #tpu.memory_space<vmem>>, %arg2: memref<3x128x128xf32, #tpu.memory_space<vmem>>, %arg3: memref<3x1x128xf32, #tpu.memory_space<vmem>>, %arg4: memref<3x128x128xf32, #tpu.memory_space<vmem>>, %arg5: memref<3x1x128xf32, #tpu.memory_space<vmem>>, %arg6: memref<128x128xf32, #tpu.memory_space<vmem>>, %arg7: memref<1x128xf32, #tpu.memory_space<vmem>>, %arg8: memref<128x128xf32, #tpu.memory_space<vmem>>) attributes {dimension_semantics = [#tpu.dimension_semantics<parallel>], iteration_bounds = array<i64: 1>, scalar_prefetch = 0 : i64, scratch_operands = 0 : i64, tpu.core_type = #tpu.core_type<tc>, window_params = [{transform_indices = @transform_0, window_bounds = array<i64: 128, 128>}, {pipeline_mode = #tpu.pipeline_mode<synchronous>, transform_indices = @transform_1, window_bounds = array<i64: 3, 128, 128>}, {pipeline_mode = #tpu.pipeline_mode<synchronous>, transform_indices = @transform_2, window_bounds = array<i64: 3, 1, 128>}, {pipeline_mode = #tpu.pipeline_mode<synchronous>, transform_indices = @transform_3, window_bounds = array<i64: 3, 128, 128>}, {pipeline_mode = #tpu.pipeline_mode<synchronous>, transform_indices = @transform_4, window_bounds = array<i64: 3, 1, 128>}, {pipeline_mode = #tpu.pipeline_mode<synchronous>, transform_indices = @transform_5, window_bounds = array<i64: 128, 128>}, {pipeline_mode = #tpu.pipeline_mode<synchronous>, transform_indices = @transform_6, window_bounds = array<i64: 1, 128>}, {transform_indices = @transform_7, window_bounds = array<i64: 128, 128>}]} {
    %c0 = arith.constant 0 : index
    %c0_0 = arith.constant 0 : index
    %0 = vector.load %arg1[%c0, %c0_0] : memref<128x128xf32, #tpu.memory_space<vmem>>, vector<128x128xf32>
    %c0_1 = arith.constant 0 : index
    %c0_2 = arith.constant 0 : index
    %c0_3 = arith.constant 0 : index
    %1 = vector.load %arg2[%c0_1, %c0_2, %c0_3] : memref<3x128x128xf32, #tpu.memory_space<vmem>>, vector<1x128x128xf32>
    %2 = vector.shape_cast %1 : vector<1x128x128xf32> to vector<128x128xf32>
    %cst = arith.constant dense<0.000000e+00> : vector<128x128xf32>
    %3 = tpu.matmul %0, %2, %cst {dimension_numbers = #tpu.dot_dimension_numbers<[1], [0], [0], [1], [0, 0, 1, 1], [], []>} : vector<128x128xf32>, vector<128x128xf32>, vector<128x128xf32> -> vector<128x128xf32>
    %c0_4 = arith.constant 0 : index
    %c0_5 = arith.constant 0 : index
    %c0_6 = arith.constant 0 : index
    %4 = vector.load %arg3[%c0_4, %c0_5, %c0_6] : memref<3x1x128xf32, #tpu.memory_space<vmem>>, vector<1x1x128xf32>
    %5 = vector.shape_cast %4 : vector<1x1x128xf32> to vector<1x128xf32>
    %6 = vector.broadcast %5 : vector<1x128xf32> to vector<128x128xf32>
    %7 = arith.addf %3, %6 : vector<128x128xf32>
    %8 = math.tanh %7 : vector<128x128xf32>
    %c0_7 = arith.constant 0 : index
    %c0_8 = arith.constant 0 : index
    %c0_9 = arith.constant 0 : index
    %9 = vector.load %arg4[%c0_7, %c0_8, %c0_9] : memref<3x128x128xf32, #tpu.memory_space<vmem>>, vector<1x128x128xf32>
    %10 = vector.shape_cast %9 : vector<1x128x128xf32> to vector<128x128xf32>
    %cst_10 = arith.constant dense<0.000000e+00> : vector<128x128xf32>
    %11 = tpu.matmul %8, %10, %cst_10 {dimension_numbers = #tpu.dot_dimension_numbers<[1], [0], [0], [1], [0, 0, 1, 1], [], []>} : vector<128x128xf32>, vector<128x128xf32>, vector<128x128xf32> -> vector<128x128xf32>
    %c0_11 = arith.constant 0 : index
    %c0_12 = arith.constant 0 : index
    %c0_13 = arith.constant 0 : index
    %12 = vector.load %arg5[%c0_11, %c0_12, %c0_13] : memref<3x1x128xf32, #tpu.memory_space<vmem>>, vector<1x1x128xf32>
    %13 = vector.shape_cast %12 : vector<1x1x128xf32> to vector<1x128xf32>
    %14 = vector.broadcast %13 : vector<1x128xf32> to vector<128x128xf32>
    %15 = arith.addf %11, %14 : vector<128x128xf32>
    %16 = arith.addf %15, %0 : vector<128x128xf32>
    %17 = math.tanh %16 : vector<128x128xf32>
    %18 = math.tanh %17 : vector<128x128xf32>
    %c1 = arith.constant 1 : index
    %c0_14 = arith.constant 0 : index
    %c0_15 = arith.constant 0 : index
    %19 = vector.load %arg2[%c1, %c0_14, %c0_15] : memref<3x128x128xf32, #tpu.memory_space<vmem>>, vector<1x128x128xf32>
    %20 = vector.shape_cast %19 : vector<1x128x128xf32> to vector<128x128xf32>
    %cst_16 = arith.constant dense<0.000000e+00> : vector<128x128xf32>
    %21 = tpu.matmul %18, %20, %cst_16 {dimension_numbers = #tpu.dot_dimension_numbers<[1], [0], [0], [1], [0, 0, 1, 1], [], []>} : vector<128x128xf32>, vector<128x128xf32>, vector<128x128xf32> -> vector<128x128xf32>
    %c1_17 = arith.constant 1 : index
    %c0_18 = arith.constant 0 : index
    %c0_19 = arith.constant 0 : index
    %22 = vector.load %arg3[%c1_17, %c0_18, %c0_19] : memref<3x1x128xf32, #tpu.memory_space<vmem>>, vector<1x1x128xf32>
    %23 = vector.shape_cast %22 : vector<1x1x128xf32> to vector<1x128xf32>
    %24 = vector.broadcast %23 : vector<1x128xf32> to vector<128x128xf32>
    %25 = arith.addf %21, %24 : vector<128x128xf32>
    %26 = math.tanh %25 : vector<128x128xf32>
    %c1_20 = arith.constant 1 : index
    %c0_21 = arith.constant 0 : index
    %c0_22 = arith.constant 0 : index
    %27 = vector.load %arg4[%c1_20, %c0_21, %c0_22] : memref<3x128x128xf32, #tpu.memory_space<vmem>>, vector<1x128x128xf32>
    %28 = vector.shape_cast %27 : vector<1x128x128xf32> to vector<128x128xf32>
    %cst_23 = arith.constant dense<0.000000e+00> : vector<128x128xf32>
    %29 = tpu.matmul %26, %28, %cst_23 {dimension_numbers = #tpu.dot_dimension_numbers<[1], [0], [0], [1], [0, 0, 1, 1], [], []>} : vector<128x128xf32>, vector<128x128xf32>, vector<128x128xf32> -> vector<128x128xf32>
    %c1_24 = arith.constant 1 : index
    %c0_25 = arith.constant 0 : index
    %c0_26 = arith.constant 0 : index
    %30 = vector.load %arg5[%c1_24, %c0_25, %c0_26] : memref<3x1x128xf32, #tpu.memory_space<vmem>>, vector<1x1x128xf32>
    %31 = vector.shape_cast %30 : vector<1x1x128xf32> to vector<1x128xf32>
    %32 = vector.broadcast %31 : vector<1x128xf32> to vector<128x128xf32>
    %33 = arith.addf %29, %32 : vector<128x128xf32>
    %34 = arith.addf %33, %18 : vector<128x128xf32>
    %35 = math.tanh %34 : vector<128x128xf32>
    %36 = math.tanh %35 : vector<128x128xf32>
    %c2 = arith.constant 2 : index
    %c0_27 = arith.constant 0 : index
    %c0_28 = arith.constant 0 : index
    %37 = vector.load %arg2[%c2, %c0_27, %c0_28] : memref<3x128x128xf32, #tpu.memory_space<vmem>>, vector<1x128x128xf32>
    %38 = vector.shape_cast %37 : vector<1x128x128xf32> to vector<128x128xf32>
    %cst_29 = arith.constant dense<0.000000e+00> : vector<128x128xf32>
    %39 = tpu.matmul %36, %38, %cst_29 {dimension_numbers = #tpu.dot_dimension_numbers<[1], [0], [0], [1], [0, 0, 1, 1], [], []>} : vector<128x128xf32>, vector<128x128xf32>, vector<128x128xf32> -> vector<128x128xf32>
    %c2_30 = arith.constant 2 : index
    %c0_31 = arith.constant 0 : index
    %c0_32 = arith.constant 0 : index
    %40 = vector.load %arg3[%c2_30, %c0_31, %c0_32] : memref<3x1x128xf32, #tpu.memory_space<vmem>>, vector<1x1x128xf32>
    %41 = vector.shape_cast %40 : vector<1x1x128xf32> to vector<1x128xf32>
    %42 = vector.broadcast %41 : vector<1x128xf32> to vector<128x128xf32>
    %43 = arith.addf %39, %42 : vector<128x128xf32>
    %44 = math.tanh %43 : vector<128x128xf32>
    %c2_33 = arith.constant 2 : index
    %c0_34 = arith.constant 0 : index
    %c0_35 = arith.constant 0 : index
    %45 = vector.load %arg4[%c2_33, %c0_34, %c0_35] : memref<3x128x128xf32, #tpu.memory_space<vmem>>, vector<1x128x128xf32>
    %46 = vector.shape_cast %45 : vector<1x128x128xf32> to vector<128x128xf32>
    %cst_36 = arith.constant dense<0.000000e+00> : vector<128x128xf32>
    %47 = tpu.matmul %44, %46, %cst_36 {dimension_numbers = #tpu.dot_dimension_numbers<[1], [0], [0], [1], [0, 0, 1, 1], [], []>} : vector<128x128xf32>, vector<128x128xf32>, vector<128x128xf32> -> vector<128x128xf32>
    %c2_37 = arith.constant 2 : index
    %c0_38 = arith.constant 0 : index
    %c0_39 = arith.constant 0 : index
    %48 = vector.load %arg5[%c2_37, %c0_38, %c0_39] : memref<3x1x128xf32, #tpu.memory_space<vmem>>, vector<1x1x128xf32>
    %49 = vector.shape_cast %48 : vector<1x1x128xf32> to vector<1x128xf32>
    %50 = vector.broadcast %49 : vector<1x128xf32> to vector<128x128xf32>
    %51 = arith.addf %47, %50 : vector<128x128xf32>
    %52 = arith.addf %51, %36 : vector<128x128xf32>
    %53 = math.tanh %52 : vector<128x128xf32>
    %54 = math.tanh %53 : vector<128x128xf32>
    %c0_40 = arith.constant 0 : index
    %c0_41 = arith.constant 0 : index
    %55 = vector.load %arg6[%c0_40, %c0_41] : memref<128x128xf32, #tpu.memory_space<vmem>>, vector<128x128xf32>
    %cst_42 = arith.constant dense<0.000000e+00> : vector<128x128xf32>
    %56 = tpu.matmul %54, %55, %cst_42 {dimension_numbers = #tpu.dot_dimension_numbers<[1], [0], [0], [1], [0, 0, 1, 1], [], []>} : vector<128x128xf32>, vector<128x128xf32>, vector<128x128xf32> -> vector<128x128xf32>
    %c0_43 = arith.constant 0 : index
    %c0_44 = arith.constant 0 : index
    %57 = vector.load %arg7[%c0_43, %c0_44] : memref<1x128xf32, #tpu.memory_space<vmem>>, vector<1x128xf32>
    %58 = vector.broadcast %57 : vector<1x128xf32> to vector<128x128xf32>
    %59 = arith.addf %56, %58 : vector<128x128xf32>
    %c0_45 = arith.constant 0 : index
    %c0_46 = arith.constant 0 : index
    %60 = vector.load %arg8[%c0_45, %c0_46] : memref<128x128xf32, #tpu.memory_space<vmem>>, vector<128x128xf32>
    tpu.vector_store %arg8[%c0_45, %c0_46], %59 {strides = array<i32>} : memref<128x128xf32, #tpu.memory_space<vmem>>, vector<128x128xf32>,
    return
  }
  func.func @transform_0(%arg0: i32) -> (i32, i32) {
    %c0_i32 = arith.constant 0 : i32
    %c0_i32_0 = arith.constant 0 : i32
    return %arg0, %c0_i32 : i32, i32
  }
  func.func @transform_1(%arg0: i32) -> (i32, i32, i32) {
    %c0_i32 = arith.constant 0 : i32
    %c0_i32_0 = arith.constant 0 : i32
    %c0_i32_1 = arith.constant 0 : i32
    %c0_i32_2 = arith.constant 0 : i32
    return %c0_i32, %c0_i32_0, %c0_i32_1 : i32, i32, i32
  }
  func.func @transform_2(%arg0: i32) -> (i32, i32, i32) {
    %c0_i32 = arith.constant 0 : i32
    %c0_i32_0 = arith.constant 0 : i32
    %c0_i32_1 = arith.constant 0 : i32
    %c0_i32_2 = arith.constant 0 : i32
    return %c0_i32, %c0_i32_0, %c0_i32_1 : i32, i32, i32
  }
  func.func @transform_3(%arg0: i32) -> (i32, i32, i32) {
    %c0_i32 = arith.constant 0 : i32
    %c0_i32_0 = arith.constant 0 : i32
    %c0_i32_1 = arith.constant 0 : i32
    %c0_i32_2 = arith.constant 0 : i32
    return %c0_i32, %c0_i32_0, %c0_i32_1 : i32, i32, i32
  }
  func.func @transform_4(%arg0: i32) -> (i32, i32, i32) {
    %c0_i32 = arith.constant 0 : i32
    %c0_i32_0 = arith.constant 0 : i32
    %c0_i32_1 = arith.constant 0 : i32
    %c0_i32_2 = arith.constant 0 : i32
    return %c0_i32, %c0_i32_0, %c0_i32_1 : i32, i32, i32
  }
  func.func @transform_5(%arg0: i32) -> (i32, i32) {
    %c0_i32 = arith.constant 0 : i32
    %c0_i32_0 = arith.constant 0 : i32
    %c0_i32_1 = arith.constant 0 : i32
    return %c0_i32, %c0_i32_0 : i32, i32
  }
  func.func @transform_6(%arg0: i32) -> (i32, i32) {
    %c0_i32 = arith.constant 0 : i32
    %c0_i32_0 = arith.constant 0 : i32
    %c0_i32_1 = arith.constant 0 : i32
    return %c0_i32, %c0_i32_0 : i32, i32
  }
  func.func @transform_7(%arg0: i32) -> (i32, i32) {
    %c0_i32 = arith.constant 0 : i32
    %c0_i32_0 = arith.constant 0 : i32
    return %arg0, %c0_i32 : i32, i32
  }
}

</mosaic_0001>

<llo_original>
// kernel: _forward.1
$region0: #{_forward.1}
  #allocation0 [shape = 'u32[]', space=smem, size = 0x4, offset = 0x4, fixed_abs, tag = 'smem constant byte address 0x4 - core index']
  #allocation1 [shape = 'u32[72,128]{1,0:T(1,128)}', space=vmem, size = 0x9000, scoped, tag = 'internal scratch']
  %s0 = inlined_call_operand.vmem [shape: f32[128,128], index: 0, kind: input, shape index: {}]
  %s1 = inlined_call_operand.vmem [shape: f32[3,128,128], index: 1, kind: input, shape index: {}]
  %s2 = inlined_call_operand.vmem [shape: f32[3,1,128], index: 2, kind: input, shape index: {}]
  %s3 = inlined_call_operand.vmem [shape: f32[3,128,128], index: 3, kind: input, shape index: {}]
  %s4 = inlined_call_operand.vmem [shape: f32[3,1,128], index: 4, kind: input, shape index: {}]
  %s5 = inlined_call_operand.vmem [shape: f32[128,128], index: 5, kind: input, shape index: {}]
  %s6 = inlined_call_operand.vmem [shape: f32[1,128], index: 6, kind: input, shape index: {}]
  %s7 = inlined_call_operand.vmem [shape: f32[128,128], index: 7, kind: output, shape index: {}]
  %s8 = sld [smem:[#allocation0]]
  $region38: #{_forward.1} parent=0
    _
  %s10 = ssub.s32 1, %s8
  %s11 = scalar_select 0, %s10, %s8
  // Predicated region
  $region2: #{_forward.1} parent=0 // pred_check
    _
  $region3: #{_forward.1} parent=0 // pred_check_branch
    %13 = sbr.rel (0) target = $region5
  $region4: #{_forward.1} parent=0 // pred_region
    _
  $region5: #{_forward.1} parent=0 // pred_fallthru
    _
  // Predicated region
  $region6: #{_forward.1} parent=0 // pred_check
    _
  $region7: #{_forward.1} parent=0 // pred_check_branch
    %15 = sbr.rel (0) target = $region9
  $region8: #{_forward.1} parent=0 // pred_region
    _
  $region9: #{_forward.1} parent=0 // pred_fallthru
    _
  // Predicated region
  $region10: #{_forward.1} parent=0 // pred_check
    _
  $region11: #{_forward.1} parent=0 // pred_check_branch
    %17 = sbr.rel (0) target = $region13
  $region12: #{_forward.1} parent=0 // pred_region
    _
  $region13: #{_forward.1} parent=0 // pred_fallthru
    _
  // Predicated region
  $region14: #{_forward.1} parent=0 // pred_check
    _
  $region15: #{_forward.1} parent=0 // pred_check_branch
    %19 = sbr.rel (0) target = $region17
  $region16: #{_forward.1} parent=0 // pred_region
    _
  $region17: #{_forward.1} parent=0 // pred_fallthru
    _
  // Predicated region
  $region18: #{_forward.1} parent=0 // pred_check
    _
  $region19: #{_forward.1} parent=0 // pred_check_branch
    %21 = sbr.rel (0) target = $region21
  $region20: #{_forward.1} parent=0 // pred_region
    _
  $region21: #{_forward.1} parent=0 // pred_fallthru
    _
  // Predicated region
  $region22: #{_forward.1} parent=0 // pred_check
    _
  $region23: #{_forward.1} parent=0 // pred_check_branch
    %23 = sbr.rel (0) target = $region25
  $region24: #{_forward.1} parent=0 // pred_region
    _
  $region25: #{_forward.1} parent=0 // pred_fallthru
    _
  // Predicated region
  $region26: #{_forward.1} parent=0 // pred_check
    _
  $region27: #{_forward.1} parent=0 // pred_check_branch
    %25 = sbr.rel (0) target = $region29
  $region28: #{_forward.1} parent=0 // pred_region
    _
  $region29: #{_forward.1} parent=0 // pred_fallthru
    _
  %v26 = vld [vmem:[%s0] sm:$0xff]
  %v27 = vld [vmem:[%s0 + $0x8] sm:$0xff]
  %v28 = vld [vmem:[%s0 + $0x10] sm:$0xff]
  %v29 = vld [vmem:[%s0 + $0x18] sm:$0xff]
  %v30 = vld [vmem:[%s0 + $0x20] sm:$0xff]
  %v31 = vld [vmem:[%s0 + $0x28] sm:$0xff]
  %v32 = vld [vmem:[%s0 + $0x30] sm:$0xff]
  %v33 = vld [vmem:[%s0 + $0x38] sm:$0xff]
  %v34 = vld [vmem:[%s0 + $0x40] sm:$0xff]
  %v35 = vld [vmem:[%s0 + $0x48] sm:$0xff]
  %v36 = vld [vmem:[%s0 + $0x50] sm:$0xff]
  %v37 = vld [vmem:[%s0 + $0x58] sm:$0xff]
  %v38 = vld [vmem:[%s0 + $0x60] sm:$0xff]
  %v39 = vld [vmem:[%s0 + $0x68] sm:$0xff]
  %v40 = vld [vmem:[%s0 + $0x70] sm:$0xff]
  %v41 = vld [vmem:[%s0 + $0x78] sm:$0xff]
  %v42 = vld [vmem:[%s1] sm:$0xff]
  %v43 = vld [vmem:[%s1 + $0x8] sm:$0xff]
  %v44 = vld [vmem:[%s1 + $0x10] sm:$0xff]
  %v45 = vld [vmem:[%s1 + $0x18] sm:$0xff]
  %v46 = vld [vmem:[%s1 + $0x20] sm:$0xff]
  %v47 = vld [vmem:[%s1 + $0x28] sm:$0xff]
  %v48 = vld [vmem:[%s1 + $0x30] sm:$0xff]
  %v49 = vld [vmem:[%s1 + $0x38] sm:$0xff]
  %v50 = vld [vmem:[%s1 + $0x40] sm:$0xff]
  %v51 = vld [vmem:[%s1 + $0x48] sm:$0xff]
  %v52 = vld [vmem:[%s1 + $0x50] sm:$0xff]
  %v53 = vld [vmem:[%s1 + $0x58] sm:$0xff]
  %v54 = vld [vmem:[%s1 + $0x60] sm:$0xff]
  %v55 = vld [vmem:[%s1 + $0x68] sm:$0xff]
  %v56 = vld [vmem:[%s1 + $0x70] sm:$0xff]
  %v57 = vld [vmem:[%s1 + $0x78] sm:$0xff]
  %v58 = vld [vmem:[%s2] sm:$0x1]
  %v60 = vperm.slane %v58, 0
  %62 = vmatpush.msra.mxu0 %v57
  %63 = vmatpush.msra.mxu0 %v56
  %64 = vmatpush.msra.mxu0 %v55
  %65 = vmatpush.msra.mxu0 %v54
  %66 = vmatpush.msra.mxu0 %v53
  %67 = vmatpush.msra.mxu0 %v52
  %68 = vmatpush.msra.mxu0 %v51
  %69 = vmatpush.msra.mxu0 %v50
  %70 = vmatpush.msra.mxu0 %v49
  %71 = vmatpush.msra.mxu0 %v48
  %72 = vmatpush.msra.mxu0 %v47
  %73 = vmatpush.msra.mxu0 %v46
  %74 = vmatpush.msra.mxu0 %v45
  %75 = vmatpush.msra.mxu0 %v44
  %76 = vmatpush.msra.mxu0 %v43
  %77 = vmatpush.msra.mxu0 %v42
  %78 = vmatmul.f32.gmra.mxu0 %v26
  %v79 = vpop.f32.mrf.mxu0
  %v80 = vadd.f32 %v60, %v79
  %81 = vmatmul.f32.gmra.mxu0 %v27
  %v82 = vpop.f32.mrf.mxu0
  %v83 = vadd.f32 %v60, %v82
  %84 = vmatmul.f32.gmra.mxu0 %v28
  %v85 = vpop.f32.mrf.mxu0
  %v86 = vadd.f32 %v60, %v85
  %87 = vmatmul.f32.gmra.mxu0 %v29
  %v88 = vpop.f32.mrf.mxu0
  %v89 = vadd.f32 %v60, %v88
  %90 = vmatmul.f32.gmra.mxu0 %v30
  %v91 = vpop.f32.mrf.mxu0
  %v92 = vadd.f32 %v60, %v91
  %93 = vmatmul.f32.gmra.mxu0 %v31
  %v94 = vpop.f32.mrf.mxu0
  %v95 = vadd.f32 %v60, %v94
  %96 = vmatmul.f32.gmra.mxu0 %v32
  %v97 = vpop.f32.mrf.mxu0
  %v98 = vadd.f32 %v60, %v97
  %99 = vmatmul.f32.gmra.mxu0 %v33
  %v100 = vpop.f32.mrf.mxu0
  %v101 = vadd.f32 %v60, %v100
  %102 = vmatmul.f32.gmra.mxu0 %v34
  %v103 = vpop.f32.mrf.mxu0
  %v104 = vadd.f32 %v60, %v103
  %105 = vmatmul.f32.gmra.mxu0 %v35
  %v106 = vpop.f32.mrf.mxu0
  %v107 = vadd.f32 %v60, %v106
  %108 = vmatmul.f32.gmra.mxu0 %v36
  %v109 = vpop.f32.mrf.mxu0
  %v110 = vadd.f32 %v60, %v109
  %111 = vmatmul.f32.gmra.mxu0 %v37
  %v112 = vpop.f32.mrf.mxu0
  %v113 = vadd.f32 %v60, %v112
  %114 = vmatmul.f32.gmra.mxu0 %v38
  %v115 = vpop.f32.mrf.mxu0
  %v116 = vadd.f32 %v60, %v115
  %117 = vmatmul.f32.gmra.mxu0 %v39
  %v118 = vpop.f32.mrf.mxu0
  %v119 = vadd.f32 %v60, %v118
  %120 = vmatmul.f32.gmra.mxu0 %v40
  %v121 = vpop.f32.mrf.mxu0
  %v122 = vadd.f32 %v60, %v121
  %123 = vmatmul.f32.gmra.mxu0 %v41
  %v124 = vpop.f32.mrf.mxu0
  %v125 = vadd.f32 %v60, %v124
  %126 = vdwg.mxu0
  %v127 = vtanh.pop %v80
  %v128 = vtanh.pop %v83
  %v129 = vtanh.pop %v86
  %v130 = vtanh.pop %v89
  %v131 = vtanh.pop %v92
  %v132 = vtanh.pop %v95
  %v133 = vtanh.pop %v98
  %v134 = vtanh.pop %v101
  %v135 = vtanh.pop %v104
  %v136 = vtanh.pop %v107
  %v137 = vtanh.pop %v110
  %v138 = vtanh.pop %v113
  %v139 = vtanh.pop %v116
  %v140 = vtanh.pop %v119
  %v141 = vtanh.pop %v122
  %v142 = vtanh.pop %v125
  %v143 = vld [vmem:[%s3] sm:$0xff]
  %v144 = vld [vmem:[%s3 + $0x8] sm:$0xff]
  %v145 = vld [vmem:[%s3 + $0x10] sm:$0xff]
  %v146 = vld [vmem:[%s3 + $0x18] sm:$0xff]
  %v147 = vld [vmem:[%s3 + $0x20] sm:$0xff]
  %v148 = vld [vmem:[%s3 + $0x28] sm:$0xff]
  %v149 = vld [vmem:[%s3 + $0x30] sm:$0xff]
  %v150 = vld [vmem:[%s3 + $0x38] sm:$0xff]
  %v151 = vld [vmem:[%s3 + $0x40] sm:$0xff]
  %v152 = vld [vmem:[%s3 + $0x48] sm:$0xff]
  %v153 = vld [vmem:[%s3 + $0x50] sm:$0xff]
  %v154 = vld [vmem:[%s3 + $0x58] sm:$0xff]
  %v155 = vld [vmem:[%s3 + $0x60] sm:$0xff]
  %v156 = vld [vmem:[%s3 + $0x68] sm:$0xff]
  %v157 = vld [vmem:[%s3 + $0x70] sm:$0xff]
  %v158 = vld [vmem:[%s3 + $0x78] sm:$0xff]
  %v159 = vld [vmem:[%s4] sm:$0x1]
  %v161 = vperm.slane %v159, 0
  %163 = vmatpush.msra.mxu0 %v158
  %164 = vmatpush.msra.mxu0 %v157
  %165 = vmatpush.msra.mxu0 %v156
  %166 = vmatpush.msra.mxu0 %v155
  %167 = vmatpush.msra.mxu0 %v154
  %168 = vmatpush.msra.mxu0 %v153
  %169 = vmatpush.msra.mxu0 %v152
  %170 = vmatpush.msra.mxu0 %v151
  %171 = vmatpush.msra.mxu0 %v150
  %172 = vmatpush.msra.mxu0 %v149
  %173 = vmatpush.msra.mxu0 %v148
  %174 = vmatpush.msra.mxu0 %v147
  %175 = vmatpush.msra.mxu0 %v146
  %176 = vmatpush.msra.mxu0 %v145
  %177 = vmatpush.msra.mxu0 %v144
  %178 = vmatpush.msra.mxu0 %v143
  %179 = vmatmul.f32.gmra.mxu0 %v127
  %v180 = vpop.f32.mrf.mxu0
  %v181 = vadd.f32 %v161, %v180
  %182 = vmatmul.f32.gmra.mxu0 %v128
  %v183 = vpop.f32.mrf.mxu0
  %v184 = vadd.f32 %v161, %v183
  %185 = vmatmul.f32.gmra.mxu0 %v129
  %v186 = vpop.f32.mrf.mxu0
  %v187 = vadd.f32 %v161, %v186
  %188 = vmatmul.f32.gmra.mxu0 %v130
  %v189 = vpop.f32.mrf.mxu0
  %v190 = vadd.f32 %v161, %v189
  %191 = vmatmul.f32.gmra.mxu0 %v131
  %v192 = vpop.f32.mrf.mxu0
  %v193 = vadd.f32 %v161, %v192
  %194 = vmatmul.f32.gmra.mxu0 %v132
  %v195 = vpop.f32.mrf.mxu0
  %v196 = vadd.f32 %v161, %v195
  %197 = vmatmul.f32.gmra.mxu0 %v133
  %v198 = vpop.f32.mrf.mxu0
  %v199 = vadd.f32 %v161, %v198
  %200 = vmatmul.f32.gmra.mxu0 %v134
  %v201 = vpop.f32.mrf.mxu0
  %v202 = vadd.f32 %v161, %v201
  %203 = vmatmul.f32.gmra.mxu0 %v135
  %v204 = vpop.f32.mrf.mxu0
  %v205 = vadd.f32 %v161, %v204
  %206 = vmatmul.f32.gmra.mxu0 %v136
  %v207 = vpop.f32.mrf.mxu0
  %v208 = vadd.f32 %v161, %v207
  %209 = vmatmul.f32.gmra.mxu0 %v137
  %v210 = vpop.f32.mrf.mxu0
  %v211 = vadd.f32 %v161, %v210
  %212 = vmatmul.f32.gmra.mxu0 %v138
  %v213 = vpop.f32.mrf.mxu0
  %v214 = vadd.f32 %v161, %v213
  %215 = vmatmul.f32.gmra.mxu0 %v139
  %v216 = vpop.f32.mrf.mxu0
  %v217 = vadd.f32 %v161, %v216
  %218 = vmatmul.f32.gmra.mxu0 %v140
  %v219 = vpop.f32.mrf.mxu0
  %v220 = vadd.f32 %v161, %v219
  %221 = vmatmul.f32.gmra.mxu0 %v141
  %v222 = vpop.f32.mrf.mxu0
  %v223 = vadd.f32 %v161, %v222
  %224 = vmatmul.f32.gmra.mxu0 %v142
  %v225 = vpop.f32.mrf.mxu0
  %v226 = vadd.f32 %v161, %v225
  %227 = vdwg.mxu0
  %v228 = vadd.f32 %v181, %v26
  %v229 = vadd.f32 %v184, %v27
  %v230 = vadd.f32 %v187, %v28
  %v231 = vadd.f32 %v190, %v29
  %v232 = vadd.f32 %v193, %v30
  %v233 = vadd.f32 %v196, %v31
  %v234 = vadd.f32 %v199, %v32
  %v235 = vadd.f32 %v202, %v33
  %v236 = vadd.f32 %v205, %v34
  %v237 = vadd.f32 %v208, %v35
  %v238 = vadd.f32 %v211, %v36
  %v239 = vadd.f32 %v214, %v37
  %v240 = vadd.f32 %v217, %v38
  %v241 = vadd.f32 %v220, %v39
  %v242 = vadd.f32 %v223, %v40
  %v243 = vadd.f32 %v226, %v41
  %v244 = vtanh.pop %v228
  %v245 = vtanh.pop %v229
  %v246 = vtanh.pop %v230
  %v247 = vtanh.pop %v231
  %v248 = vtanh.pop %v232
  %v249 = vtanh.pop %v233
  %v250 = vtanh.pop %v234
  %v251 = vtanh.pop %v235
  %v252 = vtanh.pop %v236
  %v253 = vtanh.pop %v237
  %v254 = vtanh.pop %v238
  %v255 = vtanh.pop %v239
  %v256 = vtanh.pop %v240
  %v257 = vtanh.pop %v241
  %v258 = vtanh.pop %v242
  %v259 = vtanh.pop %v243
  %v260 = vtanh.pop %v244
  %v261 = vtanh.pop %v245
  %v262 = vtanh.pop %v246
  %v263 = vtanh.pop %v247
  %v264 = vtanh.pop %v248
  %v265 = vtanh.pop %v249
  %v266 = vtanh.pop %v250
  %v267 = vtanh.pop %v251
  %v268 = vtanh.pop %v252
  %v269 = vtanh.pop %v253
  %v270 = vtanh.pop %v254
  %v271 = vtanh.pop %v255
  %v272 = vtanh.pop %v256
  %v273 = vtanh.pop %v257
  %v274 = vtanh.pop %v258
  %v275 = vtanh.pop %v259
  %s276 = scalar_lea.vmem %s1, 128
  %v277 = vld [vmem:[%s276] sm:$0xff]
  %v278 = vld [vmem:[%s276 + $0x8] sm:$0xff]
  %v279 = vld [vmem:[%s276 + $0x10] sm:$0xff]
  %v280 = vld [vmem:[%s276 + $0x18] sm:$0xff]
  %v281 = vld [vmem:[%s276 + $0x20] sm:$0xff]
  %v282 = vld [vmem:[%s276 + $0x28] sm:$0xff]
  %v283 = vld [vmem:[%s276 + $0x30] sm:$0xff]
  %v284 = vld [vmem:[%s276 + $0x38] sm:$0xff]
  %v285 = vld [vmem:[%s276 + $0x40] sm:$0xff]
  %v286 = vld [vmem:[%s276 + $0x48] sm:$0xff]
  %v287 = vld [vmem:[%s276 + $0x50] sm:$0xff]
  %v288 = vld [vmem:[%s276 + $0x58] sm:$0xff]
  %v289 = vld [vmem:[%s276 + $0x60] sm:$0xff]
  %v290 = vld [vmem:[%s276 + $0x68] sm:$0xff]
  %v291 = vld [vmem:[%s276 + $0x70] sm:$0xff]
  %v292 = vld [vmem:[%s276 + $0x78] sm:$0xff]
  %s293 = scalar_lea.vmem %s2, 1
  %v294 = vld [vmem:[%s293] sm:$0x1]
  %v296 = vperm.slane %v294, 0
  %298 = vmatpush.msra.mxu0 %v292
  %299 = vmatpush.msra.mxu0 %v291
  %300 = vmatpush.msra.mxu0 %v290
  %301 = vmatpush.msra.mxu0 %v289
  %302 = vmatpush.msra.mxu0 %v288
  %303 = vmatpush.msra.mxu0 %v287
  %304 = vmatpush.msra.mxu0 %v286
  %305 = vmatpush.msra.mxu0 %v285
  %306 = vmatpush.msra.mxu0 %v284
  %307 = vmatpush.msra.mxu0 %v283
  %308 = vmatpush.msra.mxu0 %v282
  %309 = vmatpush.msra.mxu0 %v281
  %310 = vmatpush.msra.mxu0 %v280
  %311 = vmatpush.msra.mxu0 %v279
  %312 = vmatpush.msra.mxu0 %v278
  %313 = vmatpush.msra.mxu0 %v277
  %314 = vmatmul.f32.gmra.mxu0 %v260
  %v315 = vpop.f32.mrf.mxu0
  %v316 = vadd.f32 %v296, %v315
  %317 = vmatmul.f32.gmra.mxu0 %v261
  %v318 = vpop.f32.mrf.mxu0
  %v319 = vadd.f32 %v296, %v318
  %320 = vmatmul.f32.gmra.mxu0 %v262
  %v321 = vpop.f32.mrf.mxu0
  %v322 = vadd.f32 %v296, %v321
  %323 = vmatmul.f32.gmra.mxu0 %v263
  %v324 = vpop.f32.mrf.mxu0
  %v325 = vadd.f32 %v296, %v324
  %326 = vmatmul.f32.gmra.mxu0 %v264
  %v327 = vpop.f32.mrf.mxu0
  %v328 = vadd.f32 %v296, %v327
  %329 = vmatmul.f32.gmra.mxu0 %v265
  %v330 = vpop.f32.mrf.mxu0
  %v331 = vadd.f32 %v296, %v330
  %332 = vmatmul.f32.gmra.mxu0 %v266
  %v333 = vpop.f32.mrf.mxu0
  %v334 = vadd.f32 %v296, %v333
  %335 = vmatmul.f32.gmra.mxu0 %v267
  %v336 = vpop.f32.mrf.mxu0
  %v337 = vadd.f32 %v296, %v336
  %338 = vmatmul.f32.gmra.mxu0 %v268
  %v339 = vpop.f32.mrf.mxu0
  %v340 = vadd.f32 %v296, %v339
  %341 = vmatmul.f32.gmra.mxu0 %v269
  %v342 = vpop.f32.mrf.mxu0
  %v343 = vadd.f32 %v296, %v342
  %344 = vmatmul.f32.gmra.mxu0 %v270
  %v345 = vpop.f32.mrf.mxu0
  %v346 = vadd.f32 %v296, %v345
  %347 = vmatmul.f32.gmra.mxu0 %v271
  %v348 = vpop.f32.mrf.mxu0
  %v349 = vadd.f32 %v296, %v348
  %350 = vmatmul.f32.gmra.mxu0 %v272
  %v351 = vpop.f32.mrf.mxu0
  %v352 = vadd.f32 %v296, %v351
  %353 = vmatmul.f32.gmra.mxu0 %v273
  %v354 = vpop.f32.mrf.mxu0
  %v355 = vadd.f32 %v296, %v354
  %356 = vmatmul.f32.gmra.mxu0 %v274
  %v357 = vpop.f32.mrf.mxu0
  %v358 = vadd.f32 %v296, %v357
  %359 = vmatmul.f32.gmra.mxu0 %v275
  %v360 = vpop.f32.mrf.mxu0
  %v361 = vadd.f32 %v296, %v360
  %362 = vdwg.mxu0
  %v363 = vtanh.pop %v316
  %v364 = vtanh.pop %v319
  %v365 = vtanh.pop %v322
  %v366 = vtanh.pop %v325
  %v367 = vtanh.pop %v328
  %v368 = vtanh.pop %v331
  %v369 = vtanh.pop %v334
  %v370 = vtanh.pop %v337
  %v371 = vtanh.pop %v340
  %v372 = vtanh.pop %v343
  %v373 = vtanh.pop %v346
  %v374 = vtanh.pop %v349
  %v375 = vtanh.pop %v352
  %v376 = vtanh.pop %v355
  %v377 = vtanh.pop %v358
  %v378 = vtanh.pop %v361
  %s379 = scalar_lea.vmem %s3, 128
  %v380 = vld [vmem:[%s379] sm:$0xff]
  %v381 = vld [vmem:[%s379 + $0x8] sm:$0xff]
  %v382 = vld [vmem:[%s379 + $0x10] sm:$0xff]
  %v383 = vld [vmem:[%s379 + $0x18] sm:$0xff]
  %v384 = vld [vmem:[%s379 + $0x20] sm:$0xff]
  %v385 = vld [vmem:[%s379 + $0x28] sm:$0xff]
  %v386 = vld [vmem:[%s379 + $0x30] sm:$0xff]
  %v387 = vld [vmem:[%s379 + $0x38] sm:$0xff]
  %v388 = vld [vmem:[%s379 + $0x40] sm:$0xff]
  %v389 = vld [vmem:[%s379 + $0x48] sm:$0xff]
  %v390 = vld [vmem:[%s379 + $0x50] sm:$0xff]
  %v391 = vld [vmem:[%s379 + $0x58] sm:$0xff]
  %v392 = vld [vmem:[%s379 + $0x60] sm:$0xff]
  %v393 = vld [vmem:[%s379 + $0x68] sm:$0xff]
  %v394 = vld [vmem:[%s379 + $0x70] sm:$0xff]
  %v395 = vld [vmem:[%s379 + $0x78] sm:$0xff]
  %s396 = scalar_lea.vmem %s4, 1
  %v397 = vld [vmem:[%s396] sm:$0x1]
  %v399 = vperm.slane %v397, 0
  %401 = vmatpush.msra.mxu0 %v395
  %402 = vmatpush.msra.mxu0 %v394
  %403 = vmatpush.msra.mxu0 %v393
  %404 = vmatpush.msra.mxu0 %v392
  %405 = vmatpush.msra.mxu0 %v391
  %406 = vmatpush.msra.mxu0 %v390
  %407 = vmatpush.msra.mxu0 %v389
  %408 = vmatpush.msra.mxu0 %v388
  %409 = vmatpush.msra.mxu0 %v387
  %410 = vmatpush.msra.mxu0 %v386
  %411 = vmatpush.msra.mxu0 %v385
  %412 = vmatpush.msra.mxu0 %v384
  %413 = vmatpush.msra.mxu0 %v383
  %414 = vmatpush.msra.mxu0 %v382
  %415 = vmatpush.msra.mxu0 %v381
  %416 = vmatpush.msra.mxu0 %v380
  %417 = vmatmul.f32.gmra.mxu0 %v363
  %v418 = vpop.f32.mrf.mxu0
  %v419 = vadd.f32 %v399, %v418
  %420 = vmatmul.f32.gmra.mxu0 %v364
  %v421 = vpop.f32.mrf.mxu0
  %v422 = vadd.f32 %v399, %v421
  %423 = vmatmul.f32.gmra.mxu0 %v365
  %v424 = vpop.f32.mrf.mxu0
  %v425 = vadd.f32 %v399, %v424
  %426 = vmatmul.f32.gmra.mxu0 %v366
  %v427 = vpop.f32.mrf.mxu0
  %v428 = vadd.f32 %v399, %v427
  %429 = vmatmul.f32.gmra.mxu0 %v367
  %v430 = vpop.f32.mrf.mxu0
  %v431 = vadd.f32 %v399, %v430
  %432 = vmatmul.f32.gmra.mxu0 %v368
  %v433 = vpop.f32.mrf.mxu0
  %v434 = vadd.f32 %v399, %v433
  %435 = vmatmul.f32.gmra.mxu0 %v369
  %v436 = vpop.f32.mrf.mxu0
  %v437 = vadd.f32 %v399, %v436
  %438 = vmatmul.f32.gmra.mxu0 %v370
  %v439 = vpop.f32.mrf.mxu0
  %v440 = vadd.f32 %v399, %v439
  %441 = vmatmul.f32.gmra.mxu0 %v371
  %v442 = vpop.f32.mrf.mxu0
  %v443 = vadd.f32 %v399, %v442
  %444 = vmatmul.f32.gmra.mxu0 %v372
  %v445 = vpop.f32.mrf.mxu0
  %v446 = vadd.f32 %v399, %v445
  %447 = vmatmul.f32.gmra.mxu0 %v373
  %v448 = vpop.f32.mrf.mxu0
  %v449 = vadd.f32 %v399, %v448
  %450 = vmatmul.f32.gmra.mxu0 %v374
  %v451 = vpop.f32.mrf.mxu0
  %v452 = vadd.f32 %v399, %v451
  %453 = vmatmul.f32.gmra.mxu0 %v375
  %v454 = vpop.f32.mrf.mxu0
  %v455 = vadd.f32 %v399, %v454
  %456 = vmatmul.f32.gmra.mxu0 %v376
  %v457 = vpop.f32.mrf.mxu0
  %v458 = vadd.f32 %v399, %v457
  %459 = vmatmul.f32.gmra.mxu0 %v377
  %v460 = vpop.f32.mrf.mxu0
  %v461 = vadd.f32 %v399, %v460
  %462 = vmatmul.f32.gmra.mxu0 %v378
  %v463 = vpop.f32.mrf.mxu0
  %v464 = vadd.f32 %v399, %v463
  %465 = vdwg.mxu0
  %v466 = vadd.f32 %v419, %v260
  %v467 = vadd.f32 %v422, %v261
  %v468 = vadd.f32 %v425, %v262
  %v469 = vadd.f32 %v428, %v263
  %v470 = vadd.f32 %v431, %v264
  %v471 = vadd.f32 %v434, %v265
  %v472 = vadd.f32 %v437, %v266
  %v473 = vadd.f32 %v440, %v267
  %v474 = vadd.f32 %v443, %v268
  %v475 = vadd.f32 %v446, %v269
  %v476 = vadd.f32 %v449, %v270
  %v477 = vadd.f32 %v452, %v271
  %v478 = vadd.f32 %v455, %v272
  %v479 = vadd.f32 %v458, %v273
  %v480 = vadd.f32 %v461, %v274
  %v481 = vadd.f32 %v464, %v275
  %v482 = vtanh.pop %v466
  %v483 = vtanh.pop %v467
  %v484 = vtanh.pop %v468
  %v485 = vtanh.pop %v469
  %v486 = vtanh.pop %v470
  %v487 = vtanh.pop %v471
  %v488 = vtanh.pop %v472
  %v489 = vtanh.pop %v473
  %v490 = vtanh.pop %v474
  %v491 = vtanh.pop %v475
  %v492 = vtanh.pop %v476
  %v493 = vtanh.pop %v477
  %v494 = vtanh.pop %v478
  %v495 = vtanh.pop %v479
  %v496 = vtanh.pop %v480
  %v497 = vtanh.pop %v481
  %v498 = vtanh.pop %v482
  %v499 = vtanh.pop %v483
  %v500 = vtanh.pop %v484
  %v501 = vtanh.pop %v485
  %v502 = vtanh.pop %v486
  %v503 = vtanh.pop %v487
  %v504 = vtanh.pop %v488
  %v505 = vtanh.pop %v489
  %v506 = vtanh.pop %v490
  %v507 = vtanh.pop %v491
  %v508 = vtanh.pop %v492
  %v509 = vtanh.pop %v493
  %v510 = vtanh.pop %v494
  %v511 = vtanh.pop %v495
  %v512 = vtanh.pop %v496
  %v513 = vtanh.pop %v497
  %s514 = scalar_lea.vmem %s1, 256
  %v515 = vld [vmem:[%s514] sm:$0xff]
  %v516 = vld [vmem:[%s514 + $0x8] sm:$0xff]
  %v517 = vld [vmem:[%s514 + $0x10] sm:$0xff]
  %v518 = vld [vmem:[%s514 + $0x18] sm:$0xff]
  %v519 = vld [vmem:[%s514 + $0x20] sm:$0xff]
  %v520 = vld [vmem:[%s514 + $0x28] sm:$0xff]
  %v521 = vld [vmem:[%s514 + $0x30] sm:$0xff]
  %v522 = vld [vmem:[%s514 + $0x38] sm:$0xff]
  %v523 = vld [vmem:[%s514 + $0x40] sm:$0xff]
  %v524 = vld [vmem:[%s514 + $0x48] sm:$0xff]
  %v525 = vld [vmem:[%s514 + $0x50] sm:$0xff]
  %v526 = vld [vmem:[%s514 + $0x58] sm:$0xff]
  %v527 = vld [vmem:[%s514 + $0x60] sm:$0xff]
  %v528 = vld [vmem:[%s514 + $0x68] sm:$0xff]
  %v529 = vld [vmem:[%s514 + $0x70] sm:$0xff]
  %v530 = vld [vmem:[%s514 + $0x78] sm:$0xff]
  %s531 = scalar_lea.vmem %s2, 2
  %v532 = vld [vmem:[%s531] sm:$0x1]
  %v534 = vperm.slane %v532, 0
  %536 = vmatpush.msra.mxu0 %v530
  %537 = vmatpush.msra.mxu0 %v529
  %538 = vmatpush.msra.mxu0 %v528
  %539 = vmatpush.msra.mxu0 %v527
  %540 = vmatpush.msra.mxu0 %v526
  %541 = vmatpush.msra.mxu0 %v525
  %542 = vmatpush.msra.mxu0 %v524
  %543 = vmatpush.msra.mxu0 %v523
  %544 = vmatpush.msra.mxu0 %v522
  %545 = vmatpush.msra.mxu0 %v521
  %546 = vmatpush.msra.mxu0 %v520
  %547 = vmatpush.msra.mxu0 %v519
  %548 = vmatpush.msra.mxu0 %v518
  %549 = vmatpush.msra.mxu0 %v517
  %550 = vmatpush.msra.mxu0 %v516
  %551 = vmatpush.msra.mxu0 %v515
  %552 = vmatmul.f32.gmra.mxu0 %v498
  %v553 = vpop.f32.mrf.mxu0
  %v554 = vadd.f32 %v534, %v553
  %555 = vmatmul.f32.gmra.mxu0 %v499
  %v556 = vpop.f32.mrf.mxu0
  %v557 = vadd.f32 %v534, %v556
  %558 = vmatmul.f32.gmra.mxu0 %v500
  %v559 = vpop.f32.mrf.mxu0
  %v560 = vadd.f32 %v534, %v559
  %561 = vmatmul.f32.gmra.mxu0 %v501
  %v562 = vpop.f32.mrf.mxu0
  %v563 = vadd.f32 %v534, %v562
  %564 = vmatmul.f32.gmra.mxu0 %v502
  %v565 = vpop.f32.mrf.mxu0
  %v566 = vadd.f32 %v534, %v565
  %567 = vmatmul.f32.gmra.mxu0 %v503
  %v568 = vpop.f32.mrf.mxu0
  %v569 = vadd.f32 %v534, %v568
  %570 = vmatmul.f32.gmra.mxu0 %v504
  %v571 = vpop.f32.mrf.mxu0
  %v572 = vadd.f32 %v534, %v571
  %573 = vmatmul.f32.gmra.mxu0 %v505
  %v574 = vpop.f32.mrf.mxu0
  %v575 = vadd.f32 %v534, %v574
  %576 = vmatmul.f32.gmra.mxu0 %v506
  %v577 = vpop.f32.mrf.mxu0
  %v578 = vadd.f32 %v534, %v577
  %579 = vmatmul.f32.gmra.mxu0 %v507
  %v580 = vpop.f32.mrf.mxu0
  %v581 = vadd.f32 %v534, %v580
  %582 = vmatmul.f32.gmra.mxu0 %v508
  %v583 = vpop.f32.mrf.mxu0
  %v584 = vadd.f32 %v534, %v583
  %585 = vmatmul.f32.gmra.mxu0 %v509
  %v586 = vpop.f32.mrf.mxu0
  %v587 = vadd.f32 %v534, %v586
  %588 = vmatmul.f32.gmra.mxu0 %v510
  %v589 = vpop.f32.mrf.mxu0
  %v590 = vadd.f32 %v534, %v589
  %591 = vmatmul.f32.gmra.mxu0 %v511
  %v592 = vpop.f32.mrf.mxu0
  %v593 = vadd.f32 %v534, %v592
  %594 = vmatmul.f32.gmra.mxu0 %v512
  %v595 = vpop.f32.mrf.mxu0
  %v596 = vadd.f32 %v534, %v595
  %597 = vmatmul.f32.gmra.mxu0 %v513
  %v598 = vpop.f32.mrf.mxu0
  %v599 = vadd.f32 %v534, %v598
  %600 = vdwg.mxu0
  %v601 = vtanh.pop %v554
  %v602 = vtanh.pop %v557
  %v603 = vtanh.pop %v560
  %v604 = vtanh.pop %v563
  %v605 = vtanh.pop %v566
  %v606 = vtanh.pop %v569
  %v607 = vtanh.pop %v572
  %v608 = vtanh.pop %v575
  %v609 = vtanh.pop %v578
  %v610 = vtanh.pop %v581
  %v611 = vtanh.pop %v584
  %v612 = vtanh.pop %v587
  %v613 = vtanh.pop %v590
  %v614 = vtanh.pop %v593
  %v615 = vtanh.pop %v596
  %v616 = vtanh.pop %v599
  %s617 = scalar_lea.vmem %s3, 256
  %v618 = vld [vmem:[%s617] sm:$0xff]
  %v619 = vld [vmem:[%s617 + $0x8] sm:$0xff]
  %v620 = vld [vmem:[%s617 + $0x10] sm:$0xff]
  %v621 = vld [vmem:[%s617 + $0x18] sm:$0xff]
  %v622 = vld [vmem:[%s617 + $0x20] sm:$0xff]
  %v623 = vld [vmem:[%s617 + $0x28] sm:$0xff]
  %v624 = vld [vmem:[%s617 + $0x30] sm:$0xff]
  %v625 = vld [vmem:[%s617 + $0x38] sm:$0xff]
  %v626 = vld [vmem:[%s617 + $0x40] sm:$0xff]
  %v627 = vld [vmem:[%s617 + $0x48] sm:$0xff]
  %v628 = vld [vmem:[%s617 + $0x50] sm:$0xff]
  %v629 = vld [vmem:[%s617 + $0x58] sm:$0xff]
  %v630 = vld [vmem:[%s617 + $0x60] sm:$0xff]
  %v631 = vld [vmem:[%s617 + $0x68] sm:$0xff]
  %v632 = vld [vmem:[%s617 + $0x70] sm:$0xff]
  %v633 = vld [vmem:[%s617 + $0x78] sm:$0xff]
  %s634 = scalar_lea.vmem %s4, 2
  %v635 = vld [vmem:[%s634] sm:$0x1]
  %v637 = vperm.slane %v635, 0
  %639 = vmatpush.msra.mxu0 %v633
  %640 = vmatpush.msra.mxu0 %v632
  %641 = vmatpush.msra.mxu0 %v631
  %642 = vmatpush.msra.mxu0 %v630
  %643 = vmatpush.msra.mxu0 %v629
  %644 = vmatpush.msra.mxu0 %v628
  %645 = vmatpush.msra.mxu0 %v627
  %646 = vmatpush.msra.mxu0 %v626
  %647 = vmatpush.msra.mxu0 %v625
  %648 = vmatpush.msra.mxu0 %v624
  %649 = vmatpush.msra.mxu0 %v623
  %650 = vmatpush.msra.mxu0 %v622
  %651 = vmatpush.msra.mxu0 %v621
  %652 = vmatpush.msra.mxu0 %v620
  %653 = vmatpush.msra.mxu0 %v619
  %654 = vmatpush.msra.mxu0 %v618
  %655 = vmatmul.f32.gmra.mxu0 %v601
  %v656 = vpop.f32.mrf.mxu0
  %v657 = vadd.f32 %v637, %v656
  %658 = vmatmul.f32.gmra.mxu0 %v602
  %v659 = vpop.f32.mrf.mxu0
  %v660 = vadd.f32 %v637, %v659
  %661 = vmatmul.f32.gmra.mxu0 %v603
  %v662 = vpop.f32.mrf.mxu0
  %v663 = vadd.f32 %v637, %v662
  %664 = vmatmul.f32.gmra.mxu0 %v604
  %v665 = vpop.f32.mrf.mxu0
  %v666 = vadd.f32 %v637, %v665
  %667 = vmatmul.f32.gmra.mxu0 %v605
  %v668 = vpop.f32.mrf.mxu0
  %v669 = vadd.f32 %v637, %v668
  %670 = vmatmul.f32.gmra.mxu0 %v606
  %v671 = vpop.f32.mrf.mxu0
  %v672 = vadd.f32 %v637, %v671
  %673 = vmatmul.f32.gmra.mxu0 %v607
  %v674 = vpop.f32.mrf.mxu0
  %v675 = vadd.f32 %v637, %v674
  %676 = vmatmul.f32.gmra.mxu0 %v608
  %v677 = vpop.f32.mrf.mxu0
  %v678 = vadd.f32 %v637, %v677
  %679 = vmatmul.f32.gmra.mxu0 %v609
  %v680 = vpop.f32.mrf.mxu0
  %v681 = vadd.f32 %v637, %v680
  %682 = vmatmul.f32.gmra.mxu0 %v610
  %v683 = vpop.f32.mrf.mxu0
  %v684 = vadd.f32 %v637, %v683
  %685 = vmatmul.f32.gmra.mxu0 %v611
  %v686 = vpop.f32.mrf.mxu0
  %v687 = vadd.f32 %v637, %v686
  %688 = vmatmul.f32.gmra.mxu0 %v612
  %v689 = vpop.f32.mrf.mxu0
  %v690 = vadd.f32 %v637, %v689
  %691 = vmatmul.f32.gmra.mxu0 %v613
  %v692 = vpop.f32.mrf.mxu0
  %v693 = vadd.f32 %v637, %v692
  %694 = vmatmul.f32.gmra.mxu0 %v614
  %v695 = vpop.f32.mrf.mxu0
  %v696 = vadd.f32 %v637, %v695
  %697 = vmatmul.f32.gmra.mxu0 %v615
  %v698 = vpop.f32.mrf.mxu0
  %v699 = vadd.f32 %v637, %v698
  %700 = vmatmul.f32.gmra.mxu0 %v616
  %v701 = vpop.f32.mrf.mxu0
  %v702 = vadd.f32 %v637, %v701
  %703 = vdwg.mxu0
  %v704 = vadd.f32 %v657, %v498
  %v705 = vadd.f32 %v660, %v499
  %v706 = vadd.f32 %v663, %v500
  %v707 = vadd.f32 %v666, %v501
  %v708 = vadd.f32 %v669, %v502
  %v709 = vadd.f32 %v672, %v503
  %v710 = vadd.f32 %v675, %v504
  %v711 = vadd.f32 %v678, %v505
  %v712 = vadd.f32 %v681, %v506
  %v713 = vadd.f32 %v684, %v507
  %v714 = vadd.f32 %v687, %v508
  %v715 = vadd.f32 %v690, %v509
  %v716 = vadd.f32 %v693, %v510
  %v717 = vadd.f32 %v696, %v511
  %v718 = vadd.f32 %v699, %v512
  %v719 = vadd.f32 %v702, %v513
  %v720 = vtanh.pop %v704
  %v721 = vtanh.pop %v705
  %v722 = vtanh.pop %v706
  %v723 = vtanh.pop %v707
  %v724 = vtanh.pop %v708
  %v725 = vtanh.pop %v709
  %v726 = vtanh.pop %v710
  %v727 = vtanh.pop %v711
  %v728 = vtanh.pop %v712
  %v729 = vtanh.pop %v713
  %v730 = vtanh.pop %v714
  %v731 = vtanh.pop %v715
  %v732 = vtanh.pop %v716
  %v733 = vtanh.pop %v717
  %v734 = vtanh.pop %v718
  %v735 = vtanh.pop %v719
  %v736 = vtanh.pop %v720
  %v737 = vtanh.pop %v721
  %v738 = vtanh.pop %v722
  %v739 = vtanh.pop %v723
  %v740 = vtanh.pop %v724
  %v741 = vtanh.pop %v725
  %v742 = vtanh.pop %v726
  %v743 = vtanh.pop %v727
  %v744 = vtanh.pop %v728
  %v745 = vtanh.pop %v729
  %v746 = vtanh.pop %v730
  %v747 = vtanh.pop %v731
  %v748 = vtanh.pop %v732
  %v749 = vtanh.pop %v733
  %v750 = vtanh.pop %v734
  %v751 = vtanh.pop %v735
  %v752 = vld [vmem:[%s5] sm:$0xff]
  %v753 = vld [vmem:[%s5 + $0x8] sm:$0xff]
  %v754 = vld [vmem:[%s5 + $0x10] sm:$0xff]
  %v755 = vld [vmem:[%s5 + $0x18] sm:$0xff]
  %v756 = vld [vmem:[%s5 + $0x20] sm:$0xff]
  %v757 = vld [vmem:[%s5 + $0x28] sm:$0xff]
  %v758 = vld [vmem:[%s5 + $0x30] sm:$0xff]
  %v759 = vld [vmem:[%s5 + $0x38] sm:$0xff]
  %v760 = vld [vmem:[%s5 + $0x40] sm:$0xff]
  %v761 = vld [vmem:[%s5 + $0x48] sm:$0xff]
  %v762 = vld [vmem:[%s5 + $0x50] sm:$0xff]
  %v763 = vld [vmem:[%s5 + $0x58] sm:$0xff]
  %v764 = vld [vmem:[%s5 + $0x60] sm:$0xff]
  %v765 = vld [vmem:[%s5 + $0x68] sm:$0xff]
  %v766 = vld [vmem:[%s5 + $0x70] sm:$0xff]
  %v767 = vld [vmem:[%s5 + $0x78] sm:$0xff]
  %v768 = vld [vmem:[%s6] sm:$0x1]
  %v770 = vperm.slane %v768, 0
  %772 = vmatpush.msra.mxu0 %v767
  %773 = vmatpush.msra.mxu0 %v766
  %774 = vmatpush.msra.mxu0 %v765
  %775 = vmatpush.msra.mxu0 %v764
  %776 = vmatpush.msra.mxu0 %v763
  %777 = vmatpush.msra.mxu0 %v762
  %778 = vmatpush.msra.mxu0 %v761
  %779 = vmatpush.msra.mxu0 %v760
  %780 = vmatpush.msra.mxu0 %v759
  %781 = vmatpush.msra.mxu0 %v758
  %782 = vmatpush.msra.mxu0 %v757
  %783 = vmatpush.msra.mxu0 %v756
  %784 = vmatpush.msra.mxu0 %v755
  %785 = vmatpush.msra.mxu0 %v754
  %786 = vmatpush.msra.mxu0 %v753
  %787 = vmatpush.msra.mxu0 %v752
  %788 = vmatmul.f32.gmra.mxu0 %v736
  %v789 = vpop.f32.mrf.mxu0
  %v790 = vadd.f32 %v770, %v789
  %791 = vmatmul.f32.gmra.mxu0 %v737
  %v792 = vpop.f32.mrf.mxu0
  %v793 = vadd.f32 %v770, %v792
  %794 = vmatmul.f32.gmra.mxu0 %v738
  %v795 = vpop.f32.mrf.mxu0
  %v796 = vadd.f32 %v770, %v795
  %797 = vmatmul.f32.gmra.mxu0 %v739
  %v798 = vpop.f32.mrf.mxu0
  %v799 = vadd.f32 %v770, %v798
  %800 = vmatmul.f32.gmra.mxu0 %v740
  %v801 = vpop.f32.mrf.mxu0
  %v802 = vadd.f32 %v770, %v801
  %803 = vmatmul.f32.gmra.mxu0 %v741
  %v804 = vpop.f32.mrf.mxu0
  %v805 = vadd.f32 %v770, %v804
  %806 = vmatmul.f32.gmra.mxu0 %v742
  %v807 = vpop.f32.mrf.mxu0
  %v808 = vadd.f32 %v770, %v807
  %809 = vmatmul.f32.gmra.mxu0 %v743
  %v810 = vpop.f32.mrf.mxu0
  %v811 = vadd.f32 %v770, %v810
  %812 = vmatmul.f32.gmra.mxu0 %v744
  %v813 = vpop.f32.mrf.mxu0
  %v814 = vadd.f32 %v770, %v813
  %815 = vmatmul.f32.gmra.mxu0 %v745
  %v816 = vpop.f32.mrf.mxu0
  %v817 = vadd.f32 %v770, %v816
  %818 = vmatmul.f32.gmra.mxu0 %v746
  %v819 = vpop.f32.mrf.mxu0
  %v820 = vadd.f32 %v770, %v819
  %821 = vmatmul.f32.gmra.mxu0 %v747
  %v822 = vpop.f32.mrf.mxu0
  %v823 = vadd.f32 %v770, %v822
  %824 = vmatmul.f32.gmra.mxu0 %v748
  %v825 = vpop.f32.mrf.mxu0
  %v826 = vadd.f32 %v770, %v825
  %827 = vmatmul.f32.gmra.mxu0 %v749
  %v828 = vpop.f32.mrf.mxu0
  %v829 = vadd.f32 %v770, %v828
  %830 = vmatmul.f32.gmra.mxu0 %v750
  %v831 = vpop.f32.mrf.mxu0
  %v832 = vadd.f32 %v770, %v831
  %833 = vmatmul.f32.gmra.mxu0 %v751
  %v834 = vpop.f32.mrf.mxu0
  %v835 = vadd.f32 %v770, %v834
  %836 = vdwg.mxu0
  %837 = vst [vmem:[%s7] sm:$0xff] %v790
  %838 = vst [vmem:[%s7 + $0x8] sm:$0xff] %v793
  %839 = vst [vmem:[%s7 + $0x10] sm:$0xff] %v796
  %840 = vst [vmem:[%s7 + $0x18] sm:$0xff] %v799
  %841 = vst [vmem:[%s7 + $0x20] sm:$0xff] %v802
  %842 = vst [vmem:[%s7 + $0x28] sm:$0xff] %v805
  %843 = vst [vmem:[%s7 + $0x30] sm:$0xff] %v808
  %844 = vst [vmem:[%s7 + $0x38] sm:$0xff] %v811
  %845 = vst [vmem:[%s7 + $0x40] sm:$0xff] %v814
  %846 = vst [vmem:[%s7 + $0x48] sm:$0xff] %v817
  %847 = vst [vmem:[%s7 + $0x50] sm:$0xff] %v820
  %848 = vst [vmem:[%s7 + $0x58] sm:$0xff] %v823
  %849 = vst [vmem:[%s7 + $0x60] sm:$0xff] %v826
  %850 = vst [vmem:[%s7 + $0x68] sm:$0xff] %v829
  %851 = vst [vmem:[%s7 + $0x70] sm:$0xff] %v832
  %852 = vst [vmem:[%s7 + $0x78] sm:$0xff] %v835
  // Predicated region
  $region30: #{_forward.1} parent=0 // pred_check
    _
  $region31: #{_forward.1} parent=0 // pred_check_branch
    %854 = sbr.rel (0) target = $region33
  $region32: #{_forward.1} parent=0 // pred_region
    _
  $region33: #{_forward.1} parent=0 // pred_fallthru
    _
  // Predicated region
  $region34: #{_forward.1} parent=0 // pred_check
    _
  $region35: #{_forward.1} parent=0 // pred_check_branch
    %856 = sbr.rel (0) target = $region37
  $region36: #{_forward.1} parent=0 // pred_region
    _
  $region37: #{_forward.1} parent=0 // pred_fallthru
    _

</llo_original>
